<compile_context>
chip_gen: v7x
topology: tpu7x:2x2x1
jax: 0.10.0
libtpu: 0.0.40
codegen_flags: <defaults>
</compile_context>

<pallas_src>
import functools

import jax
import jax.numpy as jnp
from jax.experimental import pallas as pl
from jax.experimental.pallas import tpu as pltpu

MAX_ROW_TILE = 64  # max (b, c) rows per block; multiple of 8


def _round_up(x, m):
    return ((x + m - 1) // m) * m


def _vmem_capacity_bytes():
    """Best-effort physical VMEM query; conservative 64 MiB fallback (v7x)."""
    try:
        info = pltpu.get_tpu_info()
        cap = getattr(info, "vmem_capacity_bytes", None)
        if cap:
            return int(cap)
    except Exception:
        pass
    return 64 << 20


def _choose_tiles(n, spatial, l_dtype, t_dtype, vmem_cap_bytes, block_elems=None):
    """Pick (row_tile, spatial_chunk, vmem_limit).

    Goals: (a) rows axis has >= 2 blocks when possible (both v7x TCs busy),
    (b) each grid step moves a large block (amortize ~0.35 us step overhead)
    while VMEM stays bounded regardless of H*W, (c) prefer a chunk that divides
    `spatial` so no ragged-tail masking is needed at all.
    """
    # --- rows ("parallel") axis ---
    row_tile = min(MAX_ROW_TILE, _round_up(n, 8))
    if pl.cdiv(n, row_tile) == 1 and row_tile > 8:
        # Split into >= 2 row blocks so megacore sharding has work for 2 TCs.
        row_tile = max(8, _round_up(pl.cdiv(n, 2), 8))

    # --- per-step element budget per input (generation aware) ---
    big_vmem = vmem_cap_bytes >= (100 << 20)          # v5e / v6e: 128 MiB
    if block_elems is None:
        block_elems = (4 << 20) if big_vmem else (2 << 20)   # elems / input / block
    max_chunk = max(128, block_elems // row_tile)

    # --- spatial ("arbitrary" reduction) axis ---
    if spatial <= max_chunk:
        chunk = spatial                       # single spatial step, full-dim block
    else:
        # Largest 128-multiple divisor of `spatial` that is <= max_chunk.
        chunk = 0
        for c in range((max_chunk // 128) * 128, 0, -128):
            if spatial % c == 0:
                chunk = c
                break
        if chunk < max(128, max_chunk // 2):
            # No good divisor: lane-aligned chunk + masked ragged last step.
            chunk = (max_chunk // 128) * 128

    # --- explicit VMEM limit (2 inputs x 2 pipeline buffers + headroom) ---
    block_bytes = row_tile * chunk * (
        jnp.dtype(l_dtype).itemsize + jnp.dtype(t_dtype).itemsize)
    limit_cap = max(32 << 20, min(96 << 20, (vmem_cap_bytes * 3) // 4))
    vmem_limit = int(min(max(2 * block_bytes + (8 << 20), 32 << 20), limit_cap))
    return row_tile, chunk, vmem_limit


def _stats_kernel(logits_ref, targets_ref, out_ref,
                  max_sc, t_sc, p_sc, pt_sc, bce_sc, *, spatial, chunk):
    """Accumulate per-row stats over the chunked spatial axis.

    out columns: 0 = max(logits), 1 = sum(t), 2 = sum(sigmoid(x)),
                 3 = sum(sigmoid(x)*t), 4 = sum(bce(x, t)), 5..7 zero.
    Stats accumulate in five tiny VMEM scratches; the packed (rows, 8) output
    block is built and stored only on the last spatial step.
    """
    j = pl.program_id(1)
    nj = pl.num_programs(1)

    x = logits_ref[...].astype(jnp.float32)          # (row_tile, chunk)
    t = targets_ref[...].astype(jnp.float32)

    # One exp shared by sigmoid and the stable BCE tail.
    e = jnp.exp(-jnp.abs(x))                         # exp(-|x|)
    log1pe = jnp.log1p(e)
    denom = 1.0 + e
    r = pl.reciprocal(denom, approx=True)            # EUP vrcp
    r = r * (2.0 - denom * r)                        # 1 Newton step -> ~1-2 ulp
    p = jnp.where(x >= 0.0, r, 1.0 - r)              # sigmoid(x)
    # Numerically stable BCE-with-logits: max(x,0) - x*t + log1p(exp(-|x|)).
    bce = jnp.maximum(x, 0.0) - x * t + log1pe

    @pl.when(j == 0)
    def _():
        max_sc[...] = jnp.full_like(max_sc, -jnp.inf)
        t_sc[...] = jnp.zeros_like(t_sc)
        p_sc[...] = jnp.zeros_like(p_sc)
        pt_sc[...] = jnp.zeros_like(pt_sc)
        bce_sc[...] = jnp.zeros_like(bce_sc)

    def accumulate(x_r, t_r, p_r, bce_r):
        max_sc[...] = jnp.maximum(max_sc[...], jnp.max(x_r, axis=-1, keepdims=True))
        t_sc[...] += jnp.sum(t_r, axis=-1, keepdims=True)
        p_sc[...] += jnp.sum(p_r, axis=-1, keepdims=True)
        pt_sc[...] += jnp.sum(p_r * t_r, axis=-1, keepdims=True)
        bce_sc[...] += jnp.sum(bce_r, axis=-1, keepdims=True)

    if spatial % chunk != 0:
        # Ragged tail: lane-mask out-of-range columns, but ONLY on the final
        # spatial step; every earlier step takes the unmasked fast path.
        is_last = j == nj - 1

        @pl.when(jnp.logical_not(is_last))
        def _():
            accumulate(x, t, p, bce)

        @pl.when(is_last)
        def _():
            lane = jax.lax.broadcasted_iota(jnp.int32, x.shape, 1)
            valid = (j * chunk + lane) < spatial
            accumulate(jnp.where(valid, x, -jnp.inf),
                       jnp.where(valid, t, 0.0),
                       jnp.where(valid, p, 0.0),
                       jnp.where(valid, bce, 0.0))
    else:
        accumulate(x, t, p, bce)

    @pl.when(j == nj - 1)
    def _():
        rows = out_ref.shape[0]
        col = jax.lax.broadcasted_iota(jnp.int32, (rows, 8), 1)
        stats = jnp.where(col == 0, max_sc[...], 0.0)
        stats = jnp.where(col == 1, t_sc[...], stats)
        stats = jnp.where(col == 2, p_sc[...], stats)
        stats = jnp.where(col == 3, pt_sc[...], stats)
        stats = jnp.where(col == 4, bce_sc[...], stats)
        out_ref[...] = stats


def _per_row_stats(logits2d, targets2d, block_elems=None):
    """Run the Pallas kernel over the flattened (B*C, H*W) arrays."""
    n, spatial = logits2d.shape
    row_tile, chunk, vmem_limit = _choose_tiles(
        n, spatial, logits2d.dtype, targets2d.dtype,
        _vmem_capacity_bytes(), block_elems)
    grid = (pl.cdiv(n, row_tile), pl.cdiv(spatial, chunk))

    # NOTE: default double-buffering is sufficient at these block sizes; a
    # pipeline_mode=pl.Buffered(3) sweep is a cheap follow-up if a trace shows
    # exposed DMA at step boundaries (budget the extra buffer on v7x's 64 MiB).
    in_spec = pl.BlockSpec((row_tile, chunk), lambda i, j: (i, j))
    out_spec = pl.BlockSpec((row_tile, 8), lambda i, j: (i, 0))

    kernel = functools.partial(_stats_kernel, spatial=spatial, chunk=chunk)
    return pl.pallas_call(
        kernel,
        out_shape=jax.ShapeDtypeStruct((n, 8), jnp.float32),
        grid_spec=pltpu.PrefetchScalarGridSpec(
            num_scalar_prefetch=0,
            grid=grid,
            in_specs=[in_spec, in_spec],
            out_specs=out_spec,
            scratch_shapes=[pltpu.VMEM((row_tile, 1), jnp.float32)] * 5,
        ),
        compiler_params=pltpu.CompilerParams(
            dimension_semantics=("parallel", "arbitrary"),
            vmem_limit_bytes=vmem_limit,
        ),
    )(logits2d, targets2d)


def combo_loss_only_pos(logits, targets, weights=(0.1, 0.0, 1.0), *,
                        block_elems=None):
    """JAX/Pallas equivalent of ComboLossOnlyPos.forward.

    * `weights` must be static Python numbers (not traced arrays).
    * The PyTorch subclass never uses `activation`, so it is omitted here.
    * Pass logits as f32 or bf16 and targets as f32/bf16/int8/bool in their
      native dtype — the kernel casts per-tile, so narrow target dtypes cut
      HBM traffic (the dominant cost on v5e/v6e).
    * Like PyTorch: NaN if there are no negative (b, c) pairs (w0 path) or no
      positive pairs (pixel-BCE path).
    """
    B, C, H, W = logits.shape
    spatial = H * W
    w0, w1, w2 = weights

    # Reshape is metadata-only; no full-size f32 copies are materialized in HBM.
    l2 = logits.reshape(B * C, spatial)
    t2 = targets.reshape(B * C, spatial)
    if jnp.issubdtype(t2.dtype, jnp.bool_):
        t2 = t2.astype(jnp.int8)        # keep 1 byte/elem through HBM

    stats = _per_row_stats(l2, t2, block_elems=block_elems)
    logits_fc = stats[:, 0]
    sum_t = stats[:, 1]
    sum_p = stats[:, 2]
    sum_pt = stats[:, 3]
    bce_sum = stats[:, 4]

    eps = 1e-9
    targets_fc = (sum_t > 0).astype(jnp.float32)          # (B*C,)
    pos = targets_fc > 0.5
    neg = jnp.logical_not(pos)
    n_pos = jnp.sum(targets_fc)
    n_neg = jnp.sum(neg.astype(jnp.float32))

    # --- image-level classification BCE on negative (b, c) pairs only ---
    # targets_fc[neg] == 0, so elementwise BCE-with-logits reduces to softplus.
    if w0:
        softplus_fc = jnp.logaddexp(0.0, logits_fc)
        loss_fc = w0 * jnp.sum(jnp.where(neg, softplus_fc, 0.0)) / n_neg
    else:
        loss_fc = jnp.float32(0.0)

    # --- pixel-level losses on positive (b, c) pairs only ---
    if w1 or w2:
        # Soft dice per positive pair (sigmoid applied inside, like SoftDiceLoss)
        dice_per = 1.0 - (2.0 * sum_pt + eps) / (sum_p + sum_t + eps)
        dice_mean = jnp.where(
            n_pos > 0,
            jnp.sum(jnp.where(pos, dice_per, 0.0)) / jnp.maximum(n_pos, 1.0),
            0.0)
        loss_seg_dice = w1 * dice_mean
        # BCE-with-logits, mean over all positive pixels (NaN if n_pos == 0,
        # matching PyTorch's mean over an empty tensor).
        loss_seg_bce = (w2 * jnp.sum(jnp.where(pos, bce_sum, 0.0))
                        / (n_pos * jnp.float32(spatial)))
    else:
        loss_seg_dice = jnp.float32(0.0)
        loss_seg_bce = jnp.float32(0.0)

    return loss_fc + loss_seg_bce + loss_seg_dice


def _reference(logits, targets, weights=(0.1, 0.0, 1.0)):
    """Pure-JAX reference replicating the PyTorch forward."""
    B, C, H, W = logits.shape
    w0, w1, w2 = weights
    eps = 1e-9
    l2 = logits.reshape(B * C, -1).astype(jnp.float32)
    t2 = targets.reshape(B * C, -1).astype(jnp.float32)
    logits_fc = jnp.max(l2, -1)
    targets_fc = (jnp.sum(t2, -1) > 0).astype(jnp.float32)
    pos = targets_fc > 0.5
    neg = jnp.logical_not(pos)
    n_pos = jnp.sum(targets_fc)
    n_neg = jnp.sum(neg.astype(jnp.float32))

    loss_fc = (w0 * jnp.sum(jnp.where(neg, jnp.logaddexp(0.0, logits_fc), 0.0)) / n_neg
               if w0 else jnp.float32(0.0))

    p = jax.nn.sigmoid(l2)
    inter = jnp.sum(p * t2, -1)
    union = jnp.sum(p, -1) + jnp.sum(t2, -1)
    dice_per = 1.0 - (2.0 * inter + eps) / (union + eps)
    dice_mean = jnp.where(n_pos > 0,
                          jnp.sum(jnp.where(pos, dice_per, 0.0)) / jnp.maximum(n_pos, 1.0),
                          0.0)
    bce = jnp.maximum(l2, 0.0) - l2 * t2 + jnp.log1p(jnp.exp(-jnp.abs(l2)))
    bce_sum = jnp.sum(bce, -1)
    loss_seg_bce = w2 * jnp.sum(jnp.where(pos, bce_sum, 0.0)) / (n_pos * (H * W))
    loss_seg_dice = w1 * dice_mean
    return loss_fc + loss_seg_bce + loss_seg_dice


if __name__ == "__main__":
    key = jax.random.PRNGKey(0)
    k1, k2 = jax.random.split(key)
    B, C, H, W = 2, 4, 16, 16
    logits = jax.random.normal(k1, (B, C, H, W), jnp.float32)
    targets = (jax.random.uniform(k2, (B, C, H, W)) > 0.7).astype(jnp.float32)
    # Ensure at least one fully-negative (b, c) channel and some positive ones,
    # so both the neg-BCE mean and the pos-only losses are well-defined.
    targets = targets.at[0, 0].set(0.0)
    targets = targets.at[1, 1, 3, 3].set(1.0)

    loss = jax.block_until_ready(combo_loss_only_pos(logits, targets))
    ref = jax.block_until_ready(_reference(logits, targets))
    assert jnp.allclose(loss, ref, atol=1e-5, rtol=1e-5), (loss, ref)

    # Non-default weights (exercises the dice path).
    w = (0.1, 0.5, 1.0)
    loss_w = jax.block_until_ready(combo_loss_only_pos(logits, targets, w))
    ref_w = jax.block_until_ready(_reference(logits, targets, w))
    assert jnp.allclose(loss_w, ref_w, atol=1e-5, rtol=1e-5), (loss_w, ref_w)

    # Narrow target dtype through the same kernel (per-tile cast, less HBM).
    loss_bf = jax.block_until_ready(
        combo_loss_only_pos(logits, targets.astype(jnp.bfloat16)))
    assert jnp.allclose(loss_bf, ref, atol=1e-5, rtol=1e-5), (loss_bf, ref)

    # Force a chunked spatial sweep with a ragged (masked) last step:
    # spatial = 400, chunk = 256 -> grid (1, 2), last block has 144 valid lanes.
    B2, C2, H2, W2 = 2, 4, 20, 20
    k3, k4 = jax.random.split(jax.random.PRNGKey(1))
    logits2 = jax.random.normal(k3, (B2, C2, H2, W2), jnp.float32)
    targets2 = (jax.random.uniform(k4, (B2, C2, H2, W2)) > 0.6).astype(jnp.float32)
    targets2 = targets2.at[0, 0].set(0.0)
    loss2 = jax.block_until_ready(
        combo_loss_only_pos(logits2, targets2, w, block_elems=8 * 256))
    ref2 = jax.block_until_ready(_reference(logits2, targets2, w))
    assert jnp.allclose(loss2, ref2, atol=1e-5, rtol=1e-5), (loss2, ref2)

    print("KERNEL_OK")
</pallas_src>

<mosaic_0001>
module attributes {stable_mosaic.version = 11 : i64} {
  func.func @_stats_kernel(%arg0: i32, %arg1: i32, %arg2: memref<8x256xf32, #tpu.memory_space<vmem>>, %arg3: memref<8x256xf32, #tpu.memory_space<vmem>>, %arg4: memref<8x8xf32, #tpu.memory_space<vmem>>, %arg5: memref<8x1xf32, #tpu.memory_space<vmem>>, %arg6: memref<8x1xf32, #tpu.memory_space<vmem>>, %arg7: memref<8x1xf32, #tpu.memory_space<vmem>>, %arg8: memref<8x1xf32, #tpu.memory_space<vmem>>, %arg9: memref<8x1xf32, #tpu.memory_space<vmem>>) attributes {dimension_semantics = [#tpu.dimension_semantics<parallel>, #tpu.dimension_semantics<arbitrary>], iteration_bounds = array<i64: 1, 1>, scalar_prefetch = 0 : i64, scratch_operands = 5 : i64, tpu.core_type = #tpu.core_type<tc>, window_params = [{transform_indices = @transform_0, window_bounds = array<i64: 8, 256>}, {transform_indices = @transform_1, window_bounds = array<i64: 8, 256>}, {transform_indices = @transform_2, window_bounds = array<i64: 8, 8>}]} {
    %c0 = arith.constant 0 : index
    %c0_0 = arith.constant 0 : index
    %0 = vector.load %arg2[%c0, %c0_0] : memref<8x256xf32, #tpu.memory_space<vmem>>, vector<8x256xf32>
    %c0_1 = arith.constant 0 : index
    %c0_2 = arith.constant 0 : index
    %1 = vector.load %arg3[%c0_1, %c0_2] : memref<8x256xf32, #tpu.memory_space<vmem>>, vector<8x256xf32>
    %2 = math.absf %0 : vector<8x256xf32>
    %cst = arith.constant 0.000000e+00 : f32
    %3 = vector.broadcast %cst : f32 to vector<8x256xf32>
    %4 = arith.subf %3, %2 : vector<8x256xf32>
    %5 = math.exp %4 : vector<8x256xf32>
    %6 = math.log1p %5 : vector<8x256xf32>
    %cst_3 = arith.constant 1.000000e+00 : f32
    %7 = vector.broadcast %cst_3 : f32 to vector<8x256xf32>
    %8 = arith.addf %7, %5 : vector<8x256xf32>
    %9 = tpu.reciprocal %8 {approx = true} : vector<8x256xf32> -> vector<8x256xf32>
    %10 = arith.mulf %8, %9 : vector<8x256xf32>
    %cst_4 = arith.constant 2.000000e+00 : f32
    %11 = vector.broadcast %cst_4 : f32 to vector<8x256xf32>
    %12 = arith.subf %11, %10 : vector<8x256xf32>
    %13 = arith.mulf %9, %12 : vector<8x256xf32>
    %cst_5 = arith.constant 0.000000e+00 : f32
    %14 = vector.broadcast %cst_5 : f32 to vector<8x256xf32>
    %15 = arith.cmpf oge, %0, %14 : vector<8x256xf32>
    %cst_6 = arith.constant 1.000000e+00 : f32
    %16 = vector.broadcast %cst_6 : f32 to vector<8x256xf32>
    %17 = arith.subf %16, %13 : vector<8x256xf32>
    %18 = arith.select %15, %13, %17 : vector<8x256xi1>, vector<8x256xf32>
    %cst_7 = arith.constant 0.000000e+00 : f32
    %19 = vector.broadcast %cst_7 : f32 to vector<8x256xf32>
    %20 = arith.maximumf %0, %19 : vector<8x256xf32>
    %21 = arith.mulf %0, %1 : vector<8x256xf32>
    %22 = arith.subf %20, %21 : vector<8x256xf32>
    %23 = arith.addf %22, %6 : vector<8x256xf32>
    %c0_i32 = arith.constant 0 : i32
    %24 = arith.cmpi eq, %arg1, %c0_i32 : i32
    %25 = arith.extui %24 : i1 to i32
    %c0_i32_8 = arith.constant 0 : i32
    %26 = arith.cmpi ne, %25, %c0_i32_8 : i32
    scf.if %26 {
      %cst_36 = arith.constant 0xFF800000 : f32
      %56 = vector.broadcast %cst_36 : f32 to vector<8x1xf32>
      %c0_37 = arith.constant 0 : index
      %c0_38 = arith.constant 0 : index
      %57 = vector.load %arg5[%c0_37, %c0_38] : memref<8x1xf32, #tpu.memory_space<vmem>>, vector<8x1xf32>
      tpu.vector_store %arg5[%c0_37, %c0_38], %56 {strides = array<i32>} : memref<8x1xf32, #tpu.memory_space<vmem>>, vector<8x1xf32>,
      %cst_39 = arith.constant 0.000000e+00 : f32
      %58 = vector.broadcast %cst_39 : f32 to vector<8x1xf32>
      %c0_40 = arith.constant 0 : index
      %c0_41 = arith.constant 0 : index
      %59 = vector.load %arg6[%c0_40, %c0_41] : memref<8x1xf32, #tpu.memory_space<vmem>>, vector<8x1xf32>
      tpu.vector_store %arg6[%c0_40, %c0_41], %58 {strides = array<i32>} : memref<8x1xf32, #tpu.memory_space<vmem>>, vector<8x1xf32>,
      %cst_42 = arith.constant 0.000000e+00 : f32
      %60 = vector.broadcast %cst_42 : f32 to vector<8x1xf32>
      %c0_43 = arith.constant 0 : index
      %c0_44 = arith.constant 0 : index
      %61 = vector.load %arg7[%c0_43, %c0_44] : memref<8x1xf32, #tpu.memory_space<vmem>>, vector<8x1xf32>
      tpu.vector_store %arg7[%c0_43, %c0_44], %60 {strides = array<i32>} : memref<8x1xf32, #tpu.memory_space<vmem>>, vector<8x1xf32>,
      %cst_45 = arith.constant 0.000000e+00 : f32
      %62 = vector.broadcast %cst_45 : f32 to vector<8x1xf32>
      %c0_46 = arith.constant 0 : index
      %c0_47 = arith.constant 0 : index
      %63 = vector.load %arg8[%c0_46, %c0_47] : memref<8x1xf32, #tpu.memory_space<vmem>>, vector<8x1xf32>
      tpu.vector_store %arg8[%c0_46, %c0_47], %62 {strides = array<i32>} : memref<8x1xf32, #tpu.memory_space<vmem>>, vector<8x1xf32>,
      %cst_48 = arith.constant 0.000000e+00 : f32
      %64 = vector.broadcast %cst_48 : f32 to vector<8x1xf32>
      %c0_49 = arith.constant 0 : index
      %c0_50 = arith.constant 0 : index
      %65 = vector.load %arg9[%c0_49, %c0_50] : memref<8x1xf32, #tpu.memory_space<vmem>>, vector<8x1xf32>
      tpu.vector_store %arg9[%c0_49, %c0_50], %64 {strides = array<i32>} : memref<8x1xf32, #tpu.memory_space<vmem>>, vector<8x1xf32>,
    } else {
    }
    %c0_9 = arith.constant 0 : index
    %c0_10 = arith.constant 0 : index
    %27 = vector.load %arg5[%c0_9, %c0_10] : memref<8x1xf32, #tpu.memory_space<vmem>>, vector<8x1xf32>
    %cst_11 = arith.constant dense<0xFF800000> : vector<8xf32>
    %28 = vector.multi_reduction <maximumf>, %0, %cst_11 [1] : vector<8x256xf32> to vector<8xf32>
    %29 = vector.shape_cast %28 : vector<8xf32> to vector<8x1xf32>
    %30 = arith.maximumf %27, %29 : vector<8x1xf32>
    %c0_12 = arith.constant 0 : index
    %c0_13 = arith.constant 0 : index
    %31 = vector.load %arg5[%c0_12, %c0_13] : memref<8x1xf32, #tpu.memory_space<vmem>>, vector<8x1xf32>
    tpu.vector_store %arg5[%c0_12, %c0_13], %30 {strides = array<i32>} : memref<8x1xf32, #tpu.memory_space<vmem>>, vector<8x1xf32>,
    %c0_14 = arith.constant 0 : index
    %c0_15 = arith.constant 0 : index
    %32 = vector.load %arg6[%c0_14, %c0_15] : memref<8x1xf32, #tpu.memory_space<vmem>>, vector<8x1xf32>
    %cst_16 = arith.constant dense<0.000000e+00> : vector<8xf32>
    %33 = vector.multi_reduction <add>, %1, %cst_16 [1] : vector<8x256xf32> to vector<8xf32>
    %34 = vector.shape_cast %33 : vector<8xf32> to vector<8x1xf32>
    %35 = arith.addf %32, %34 : vector<8x1xf32>
    %c0_17 = arith.constant 0 : index
    %c0_18 = arith.constant 0 : index
    %36 = vector.load %arg6[%c0_17, %c0_18] : memref<8x1xf32, #tpu.memory_space<vmem>>, vector<8x1xf32>
    tpu.vector_store %arg6[%c0_17, %c0_18], %35 {strides = array<i32>} : memref<8x1xf32, #tpu.memory_space<vmem>>, vector<8x1xf32>,
    %c0_19 = arith.constant 0 : index
    %c0_20 = arith.constant 0 : index
    %37 = vector.load %arg7[%c0_19, %c0_20] : memref<8x1xf32, #tpu.memory_space<vmem>>, vector<8x1xf32>
    %cst_21 = arith.constant dense<0.000000e+00> : vector<8xf32>
    %38 = vector.multi_reduction <add>, %18, %cst_21 [1] : vector<8x256xf32> to vector<8xf32>
    %39 = vector.shape_cast %38 : vector<8xf32> to vector<8x1xf32>
    %40 = arith.addf %37, %39 : vector<8x1xf32>
    %c0_22 = arith.constant 0 : index
    %c0_23 = arith.constant 0 : index
    %41 = vector.load %arg7[%c0_22, %c0_23] : memref<8x1xf32, #tpu.memory_space<vmem>>, vector<8x1xf32>
    tpu.vector_store %arg7[%c0_22, %c0_23], %40 {strides = array<i32>} : memref<8x1xf32, #tpu.memory_space<vmem>>, vector<8x1xf32>,
    %c0_24 = arith.constant 0 : index
    %c0_25 = arith.constant 0 : index
    %42 = vector.load %arg8[%c0_24, %c0_25] : memref<8x1xf32, #tpu.memory_space<vmem>>, vector<8x1xf32>
    %43 = arith.mulf %18, %1 : vector<8x256xf32>
    %cst_26 = arith.constant dense<0.000000e+00> : vector<8xf32>
    %44 = vector.multi_reduction <add>, %43, %cst_26 [1] : vector<8x256xf32> to vector<8xf32>
    %45 = vector.shape_cast %44 : vector<8xf32> to vector<8x1xf32>
    %46 = arith.addf %42, %45 : vector<8x1xf32>
    %c0_27 = arith.constant 0 : index
    %c0_28 = arith.constant 0 : index
    %47 = vector.load %arg8[%c0_27, %c0_28] : memref<8x1xf32, #tpu.memory_space<vmem>>, vector<8x1xf32>
    tpu.vector_store %arg8[%c0_27, %c0_28], %46 {strides = array<i32>} : memref<8x1xf32, #tpu.memory_space<vmem>>, vector<8x1xf32>,
    %c0_29 = arith.constant 0 : index
    %c0_30 = arith.constant 0 : index
    %48 = vector.load %arg9[%c0_29, %c0_30] : memref<8x1xf32, #tpu.memory_space<vmem>>, vector<8x1xf32>
    %cst_31 = arith.constant dense<0.000000e+00> : vector<8xf32>
    %49 = vector.multi_reduction <add>, %23, %cst_31 [1] : vector<8x256xf32> to vector<8xf32>
    %50 = vector.shape_cast %49 : vector<8xf32> to vector<8x1xf32>
    %51 = arith.addf %48, %50 : vector<8x1xf32>
    %c0_32 = arith.constant 0 : index
    %c0_33 = arith.constant 0 : index
    %52 = vector.load %arg9[%c0_32, %c0_33] : memref<8x1xf32, #tpu.memory_space<vmem>>, vector<8x1xf32>
    tpu.vector_store %arg9[%c0_32, %c0_33], %51 {strides = array<i32>} : memref<8x1xf32, #tpu.memory_space<vmem>>, vector<8x1xf32>,
    %c0_i32_34 = arith.constant 0 : i32
    %53 = arith.cmpi eq, %arg1, %c0_i32_34 : i32
    %54 = arith.extui %53 : i1 to i32
    %c0_i32_35 = arith.constant 0 : i32
    %55 = arith.cmpi ne, %54, %c0_i32_35 : i32
    scf.if %55 {
      %56 = tpu.iota {dimensions = array<i32: 1>} : vector<8x8xi32>
      %c0_i32_36 = arith.constant 0 : i32
      %57 = vector.broadcast %c0_i32_36 : i32 to vector<8x8xi32>
      %58 = arith.cmpi eq, %56, %57 : vector<8x8xi32>
      %c0_37 = arith.constant 0 : index
      %c0_38 = arith.constant 0 : index
      %59 = vector.load %arg5[%c0_37, %c0_38] : memref<8x1xf32, #tpu.memory_space<vmem>>, vector<8x1xf32>
      %cst_39 = arith.constant 0.000000e+00 : f32
      %60 = vector.shape_cast %59 : vector<8x1xf32> to vector<8x1xf32>
      %61 = vector.broadcast %60 : vector<8x1xf32> to vector<8x8xf32>
      %62 = vector.broadcast %cst_39 : f32 to vector<8x8xf32>
      %63 = arith.select %58, %61, %62 : vector<8x8xi1>, vector<8x8xf32>
      %c1_i32 = arith.constant 1 : i32
      %64 = vector.broadcast %c1_i32 : i32 to vector<8x8xi32>
      %65 = arith.cmpi eq, %56, %64 : vector<8x8xi32>
      %c0_40 = arith.constant 0 : index
      %c0_41 = arith.constant 0 : index
      %66 = vector.load %arg6[%c0_40, %c0_41] : memref<8x1xf32, #tpu.memory_space<vmem>>, vector<8x1xf32>
      %67 = vector.shape_cast %66 : vector<8x1xf32> to vector<8x1xf32>
      %68 = vector.broadcast %67 : vector<8x1xf32> to vector<8x8xf32>
      %69 = arith.select %65, %68, %63 : vector<8x8xi1>, vector<8x8xf32>
      %c2_i32 = arith.constant 2 : i32
      %70 = vector.broadcast %c2_i32 : i32 to vector<8x8xi32>
      %71 = arith.cmpi eq, %56, %70 : vector<8x8xi32>
      %c0_42 = arith.constant 0 : index
      %c0_43 = arith.constant 0 : index
      %72 = vector.load %arg7[%c0_42, %c0_43] : memref<8x1xf32, #tpu.memory_space<vmem>>, vector<8x1xf32>
      %73 = vector.shape_cast %72 : vector<8x1xf32> to vector<8x1xf32>
      %74 = vector.broadcast %73 : vector<8x1xf32> to vector<8x8xf32>
      %75 = arith.select %71, %74, %69 : vector<8x8xi1>, vector<8x8xf32>
      %c3_i32 = arith.constant 3 : i32
      %76 = vector.broadcast %c3_i32 : i32 to vector<8x8xi32>
      %77 = arith.cmpi eq, %56, %76 : vector<8x8xi32>
      %c0_44 = arith.constant 0 : index
      %c0_45 = arith.constant 0 : index
      %78 = vector.load %arg8[%c0_44, %c0_45] : memref<8x1xf32, #tpu.memory_space<vmem>>, vector<8x1xf32>
      %79 = vector.shape_cast %78 : vector<8x1xf32> to vector<8x1xf32>
      %80 = vector.broadcast %79 : vector<8x1xf32> to vector<8x8xf32>
      %81 = arith.select %77, %80, %75 : vector<8x8xi1>, vector<8x8xf32>
      %c4_i32 = arith.constant 4 : i32
      %82 = vector.broadcast %c4_i32 : i32 to vector<8x8xi32>
      %83 = arith.cmpi eq, %56, %82 : vector<8x8xi32>
      %c0_46 = arith.constant 0 : index
      %c0_47 = arith.constant 0 : index
      %84 = vector.load %arg9[%c0_46, %c0_47] : memref<8x1xf32, #tpu.memory_space<vmem>>, vector<8x1xf32>
      %85 = vector.shape_cast %84 : vector<8x1xf32> to vector<8x1xf32>
      %86 = vector.broadcast %85 : vector<8x1xf32> to vector<8x8xf32>
      %87 = arith.select %83, %86, %81 : vector<8x8xi1>, vector<8x8xf32>
      %c0_48 = arith.constant 0 : index
      %c0_49 = arith.constant 0 : index
      %88 = vector.load %arg4[%c0_48, %c0_49] : memref<8x8xf32, #tpu.memory_space<vmem>>, vector<8x8xf32>
      tpu.vector_store %arg4[%c0_48, %c0_49], %87 {strides = array<i32>} : memref<8x8xf32, #tpu.memory_space<vmem>>, vector<8x8xf32>,
    } else {
    }
    return
  }
  func.func @transform_0(%arg0: i32, %arg1: i32) -> (i32, i32) {
    %c0_i32 = arith.constant 0 : i32
    return %arg0, %arg1 : i32, i32
  }
  func.func @transform_1(%arg0: i32, %arg1: i32) -> (i32, i32) {
    %c0_i32 = arith.constant 0 : i32
    return %arg0, %arg1 : i32, i32
  }
  func.func @transform_2(%arg0: i32, %arg1: i32) -> (i32, i32) {
    %c0_i32 = arith.constant 0 : i32
    %c0_i32_0 = arith.constant 0 : i32
    return %arg0, %c0_i32 : i32, i32
  }
}

</mosaic_0001>

<llo_original>
// kernel: tpu_custom_call.1
$region0: #{tpu_custom_call.1}
  #allocation0 [shape = 'u32[]', space=smem, size = 0x4, offset = 0x4, fixed_abs, tag = 'smem constant byte address 0x4 - core index']
  #allocation1 [shape = 'u32[144,128]{1,0:T(1,128)}', space=vmem, size = 0x12000, scoped, tag = 'internal scratch']
  #allocation2 [shape = 'f32[8,1]{1,0:T(8,128)}', space=vmem, size = 0x1000, scoped, tag = 'scratch operand']
  #allocation3 [shape = 'f32[8,1]{1,0:T(8,128)}', space=vmem, size = 0x1000, scoped, tag = 'scratch operand']
  #allocation4 [shape = 'f32[8,1]{1,0:T(8,128)}', space=vmem, size = 0x1000, scoped, tag = 'scratch operand']
  #allocation5 [shape = 'f32[8,1]{1,0:T(8,128)}', space=vmem, size = 0x1000, scoped, tag = 'scratch operand']
  #allocation6 [shape = 'f32[8,1]{1,0:T(8,128)}', space=vmem, size = 0x1000, scoped, tag = 'scratch operand']
  %s0 = inlined_call_operand.hbm [shape: f32[8,256], index: 0, kind: input, shape index: {}]
  %s1 = inlined_call_operand.hbm [shape: f32[8,256], index: 1, kind: input, shape index: {}]
  %s2 = inlined_call_operand.hbm [shape: f32[8,8], index: 2, kind: output, shape index: {}]
  %s3 = sld [smem:[#allocation0]]
  $region34: #{tpu_custom_call.1} parent=0
    _
  %s5 = ssub.s32 1, %s3
  %s6 = scalar_select 0, %s5, %s3
  $region1: #{tpu_custom_call.1} parent=0
    #allocation7 [shape = 'u8[8192]{0}', space=vmem, size = 0x2000, scoped, tag = 'input window, operand 0, single buffered']
    #allocation8 [shape = 's32[1]{0}', space=sflag, size = 0x4, scoped, tag = 'scoped memory for tpu_custom_call.1']
    #allocation9 [shape = 's32[1]{0}', space=sflag, size = 0x4, scoped, tag = 'scoped memory for tpu_custom_call.1']
    #allocation10 [shape = 'u8[8192]{0}', space=vmem, size = 0x2000, scoped, tag = 'input window, operand 1, single buffered']
    #allocation11 [shape = 's32[1]{0}', space=sflag, size = 0x4, scoped, tag = 'scoped memory for tpu_custom_call.1']
    #allocation12 [shape = 'u8[4096]{0}', space=vmem, size = 0x1000, scoped, tag = 'output window, operand 0, single buffered']
    %7 = vsyncpa [#allocation8], 0
    %8 = vsyncpa [#allocation11], 0
    %9 = vsyncpa [#allocation9], 0
    // Predicated region
    $region2: #{tpu_custom_call.1} parent=1 // pred_check
      _
    $region3: #{tpu_custom_call.1} parent=1 // pred_check_branch
      %11 = sbr.rel (0) target = $region5
    $region4: #{tpu_custom_call.1} parent=1 // pred_region
      %s13 = ssub.s32 256, 256
      %14 = vsyncadd [#allocation8], %s13
      %s16 = sshll.u32 [#allocation7], 4
      %s17 = int_to_ptr.vmem [resolvable:$true] %s16
      %19 = dma.hbm_to_vmem [thread:$0]  %s0, 256, %s17, [#allocation8]
    $region5: #{tpu_custom_call.1} parent=1 // pred_fallthru
      _
    // Predicated region
    $region6: #{tpu_custom_call.1} parent=1 // pred_check
      _
    $region7: #{tpu_custom_call.1} parent=1 // pred_check_branch
      %21 = sbr.rel (0) target = $region9
    $region8: #{tpu_custom_call.1} parent=1 // pred_region
      %s23 = ssub.s32 256, 256
      %24 = vsyncadd [#allocation11], %s23
      %s26 = sshll.u32 [#allocation10], 4
      %s27 = int_to_ptr.vmem [resolvable:$true] %s26
      %29 = dma.hbm_to_vmem [thread:$0]  %s1, 256, %s27, [#allocation11]
    $region9: #{tpu_custom_call.1} parent=1 // pred_fallthru
      _
    // Predicated region
    $region10: #{tpu_custom_call.1} parent=1 // pred_check
      _
    $region11: #{tpu_custom_call.1} parent=1 // pred_check_branch
      %31 = sbr.rel (0) target = $region13
    $region12: #{tpu_custom_call.1} parent=1 // pred_region
      %32 = dma.done [#allocation8], 256
    $region13: #{tpu_custom_call.1} parent=1 // pred_fallthru
      _
    // Predicated region
    $region14: #{tpu_custom_call.1} parent=1 // pred_check
      _
    $region15: #{tpu_custom_call.1} parent=1 // pred_check_branch
      %34 = sbr.rel (0) target = $region17
    $region16: #{tpu_custom_call.1} parent=1 // pred_region
      %35 = dma.done [#allocation11], 256
    $region17: #{tpu_custom_call.1} parent=1 // pred_fallthru
      _
    %v36 = vld [vmem:[#allocation7] sm:$0xff]
    %v37 = vld [vmem:[#allocation7 + $0x8] sm:$0xff]
    %v38 = vld [vmem:[#allocation10] sm:$0xff]
    %v39 = vld [vmem:[#allocation10 + $0x8] sm:$0xff]
    %v40 = vand.u32 2147483647, %v36
    %v41 = vand.u32 2147483647, %v37
    %v42 = vsub.f32 0.0, %v40
    %v43 = vsub.f32 0.0, %v41
    %v44 = vmul.f32 %v42, 1.442695
    %v45 = vpow.pop %v44
    %v46 = vmul.f32 %v43, 1.442695
    %v47 = vpow.pop %v46
    %v48 = vadd.f32 %v45, 1.0
    %v49 = vlog2.pop %v48
    %v50 = vmul.f32 %v49, 0.6931472
    %v51 = vmul.f32 -0.5, %v45
    %v52 = vadd.f32 %v51, 1.0
    %v53 = vmul.f32 %v52, %v45
    %v54 = vand.u32 2147483647, %v45
    %vm55 = vcmp.lt.f32.partialorder %v54, 0.0004427343
    %v56 = vsel %vm55, %v53, %v50
    %v57 = vadd.f32 %v47, 1.0
    %v58 = vlog2.pop %v57
    %v59 = vmul.f32 %v58, 0.6931472
    %v60 = vmul.f32 -0.5, %v47
    %v61 = vadd.f32 %v60, 1.0
    %v62 = vmul.f32 %v61, %v47
    %v63 = vand.u32 2147483647, %v47
    %vm64 = vcmp.lt.f32.partialorder %v63, 0.0004427343
    %v65 = vsel %vm64, %v62, %v59
    %v66 = vadd.f32 %v45, 1.0
    %v67 = vadd.f32 %v47, 1.0
    %v68 = vrcp.pop %v66
    %v69 = vrcp.pop %v67
    %v70 = vmul.f32 %v66, %v68
    %v71 = vmul.f32 %v67, %v69
    %v72 = vsub.f32 2.0, %v70
    %v73 = vsub.f32 2.0, %v71
    %v74 = vmul.f32 %v68, %v72
    %v75 = vmul.f32 %v69, %v73
    %vm76 = vcmp.ge.f32.partialorder %v36, 0.0
    %vm77 = vcmp.ge.f32.partialorder %v37, 0.0
    %v78 = vsub.f32 1.0, %v74
    %v79 = vsub.f32 1.0, %v75
    %v80 = vsel %vm76, %v74, %v78
    %v81 = vsel %vm77, %v75, %v79
    %v82 = vmax.f32 %v36, 0.0
    %v83 = vmax.f32 %v37, 0.0
    %v84 = vmul.f32 %v36, %v38
    %v85 = vmul.f32 %v37, %v39
    %v86 = vsub.f32 %v82, %v84
    %v87 = vsub.f32 %v83, %v85
    %v88 = vadd.f32 %v86, %v56
    %v89 = vadd.f32 %v87, %v65
    %p90 = scmp.eq.s32.totalorder 0, 0
    // Predicated region
    $region18: #{tpu_custom_call.1} parent=1 // pred_check
      %p91 = pneg %p90
    $region19: #{tpu_custom_call.1} parent=1 // pred_check_branch
      %93 = sbr.rel (%p91) target = $region21
    $region20: #{tpu_custom_call.1} parent=1 // pred_region
      %vm94 = vcmask 7168
      %95 = vst.msk [vmem:[#allocation2] sm:$0xff] %vm94, -inf
      %96 = vst.msk [vmem:[#allocation3] sm:$0xff] %vm94, 0.0
      %97 = vst.msk [vmem:[#allocation4] sm:$0xff] %vm94, 0.0
      %98 = vst.msk [vmem:[#allocation5] sm:$0xff] %vm94, 0.0
      %99 = vst.msk [vmem:[#allocation6] sm:$0xff] %vm94, 0.0
    $region21: #{tpu_custom_call.1} parent=1 // pred_fallthru
      _
    %v100 = vld [vmem:[#allocation2] sm:$0xff]
    %v101 = vmax.f32 %v36, %v37
    %102 = vmax.xlane.f32.xlu0 %v101
    %v103 = vpop.xlane.xlu0 %102
    %v104 = vmax.f32 %v100, %v103
    %vm105 = vcmask 7168
    %106 = vst.msk [vmem:[#allocation2] sm:$0xff] %vm105, %v104
    %v107 = vld [vmem:[#allocation3] sm:$0xff]
    %v108 = vadd.f32 %v38, %v39
    %109 = vadd.xlane.f32.xlu0 %v108
    %v110 = vpop.xlane.xlu0 %109
    %v111 = vadd.f32 %v107, %v110
    %112 = vst.msk [vmem:[#allocation3] sm:$0xff] %vm105, %v111
    %v113 = vld [vmem:[#allocation4] sm:$0xff]
    %v114 = vadd.f32 %v80, %v81
    %115 = vadd.xlane.f32.xlu0 %v114
    %v116 = vpop.xlane.xlu0 %115
    %v117 = vadd.f32 %v113, %v116
    %118 = vst.msk [vmem:[#allocation4] sm:$0xff] %vm105, %v117
    %v119 = vld [vmem:[#allocation5] sm:$0xff]
    %v120 = vmul.f32 %v80, %v38
    %v121 = vmul.f32 %v81, %v39
    %v122 = vadd.f32 %v120, %v121
    %123 = vadd.xlane.f32.xlu0 %v122
    %v124 = vpop.xlane.xlu0 %123
    %v125 = vadd.f32 %v119, %v124
    %126 = vst.msk [vmem:[#allocation5] sm:$0xff] %vm105, %v125
    %v127 = vld [vmem:[#allocation6] sm:$0xff]
    %v128 = vadd.f32 %v88, %v89
    %129 = vadd.xlane.f32.xlu0 %v128
    %v130 = vpop.xlane.xlu0 %129
    %v131 = vadd.f32 %v127, %v130
    %132 = vst.msk [vmem:[#allocation6] sm:$0xff] %vm105, %v131
    // Predicated region
    $region22: #{tpu_custom_call.1} parent=1 // pred_check
      %p133 = pneg %p90
    $region23: #{tpu_custom_call.1} parent=1 // pred_check_branch
      %135 = sbr.rel (%p133) target = $region25
    $region24: #{tpu_custom_call.1} parent=1 // pred_region
      %v136 = vlaneseq
      %v137 = vand.u32 %v136, 127
      %vm138 = vcmp.eq.s32.totalorder %v137, 0
      %v139 = vld [vmem:[#allocation2] sm:$0xff]
      %141 = vset.pattern.permute.xlu0 0
      %142 = vperm.xlu0 %141, %v139
      %v143 = vpop.permute.xlu0 %142
      %v145 = vsel %vm138, %v143, 0.0
      %vm146 = vcmp.eq.s32.totalorder %v137, 1
      %v147 = vld [vmem:[#allocation3] sm:$0xff]
      %149 = vset.pattern.permute.xlu0 0
      %150 = vperm.xlu0 %149, %v147
      %v151 = vpop.permute.xlu0 %150
      %v153 = vsel %vm146, %v151, %v145
      %vm154 = vcmp.eq.s32.totalorder %v137, 2
      %v155 = vld [vmem:[#allocation4] sm:$0xff]
      %157 = vset.pattern.permute.xlu0 0
      %158 = vperm.xlu0 %157, %v155
      %v159 = vpop.permute.xlu0 %158
      %v161 = vsel %vm154, %v159, %v153
      %vm162 = vcmp.eq.s32.totalorder %v137, 3
      %v163 = vld [vmem:[#allocation5] sm:$0xff]
      %165 = vset.pattern.permute.xlu0 0
      %166 = vperm.xlu0 %165, %v163
      %v167 = vpop.permute.xlu0 %166
      %v169 = vsel %vm162, %v167, %v161
      %vm170 = vcmp.eq.s32.totalorder %v137, 4
      %v171 = vld [vmem:[#allocation6] sm:$0xff]
      %173 = vset.pattern.permute.xlu0 0
      %174 = vperm.xlu0 %173, %v171
      %v175 = vpop.permute.xlu0 %174
      %v177 = vsel %vm170, %v175, %v169
      %vm178 = vcmask 64512
      %179 = vst.msk [vmem:[#allocation12] sm:$0xff] %vm178, %v177
    $region25: #{tpu_custom_call.1} parent=1 // pred_fallthru
      _
    // Predicated region
    $region26: #{tpu_custom_call.1} parent=1 // pred_check
      _
    $region27: #{tpu_custom_call.1} parent=1 // pred_check_branch
      %181 = sbr.rel (0) target = $region29
    $region28: #{tpu_custom_call.1} parent=1 // pred_region
      %s183 = ssub.s32 128, 128
      %184 = vsyncadd [#allocation9], %s183
      %s186 = sshll.u32 [#allocation12], 4
      %s187 = int_to_ptr.vmem [resolvable:$true] %s186
      %189 = dma.vmem_to_hbm [thread:$0]  %s187, 128, %s2, [#allocation9]
    $region29: #{tpu_custom_call.1} parent=1 // pred_fallthru
      _
    // Predicated region
    $region30: #{tpu_custom_call.1} parent=1 // pred_check
      _
    $region31: #{tpu_custom_call.1} parent=1 // pred_check_branch
      %191 = sbr.rel (0) target = $region33
    $region32: #{tpu_custom_call.1} parent=1 // pred_region
      %192 = dma.done [#allocation9], 128
    $region33: #{tpu_custom_call.1} parent=1 // pred_fallthru
      _
    %193 = vsyncpa [#allocation8], 1
    %194 = vsyncpa [#allocation11], 1
    %195 = vsyncpa [#allocation9], 1

</llo_original>
